<compile_context>
chip_gen: v5e
topology: v5e:2x2
jax: 0.10.0
libtpu: 0.0.40
codegen_flags: <defaults>
</compile_context>

<pallas_src>
import functools

import jax
import jax.numpy as jnp
from jax.experimental import pallas as pl
from jax.experimental.pallas import tpu as pltpu

LN_EPS = 1e-5
LANE = 128
SUBLANE = 8


def _fused_mlp_kernel(*refs, n_layers):
    """Fused MLPNeck forward over one batch tile.

    refs = (x_ref, [w0, vecs0], [w1, vecs1], ..., o_ref)
      hidden layer i: w_i (d_in, d_out) bf16, vecs_i (3, d_out) f32 = [bias; gamma; beta]
      last layer:     w   (d_in, d_out_pad) bf16, vecs (1, d_out_pad) f32 = [bias]
    Hidden layers: Linear -> LayerNorm -> ReLU (elementwise in f32).
    Last layer:    Linear only (output columns may be zero-padded to 128 lanes).
    """
    x_ref = refs[0]
    o_ref = refs[-1]
    param_refs = refs[1:-1]

    h = x_ref[...]  # native dtype (bf16) straight into the MXU
    idx = 0
    for step in range(n_layers):
        w_ref, vec_ref = param_refs[idx], param_refs[idx + 1]
        idx += 2
        lhs = h if h.dtype == w_ref.dtype else h.astype(w_ref.dtype)
        # MXU matmul, f32 accumulation.
        y = jnp.dot(lhs, w_ref[...], preferred_element_type=jnp.float32)
        if step < n_layers - 1:
            vecs = vec_ref[...].astype(jnp.float32)      # (3, d)
            bias = vecs[0:1, :]
            gamma = vecs[1:2, :]
            beta = vecs[2:3, :]
            y = y + bias
            # LayerNorm via two independent reductions (overlapping XLU reduces),
            # folded into a single scale/shift pass; f32 throughout.
            inv_d = 1.0 / y.shape[-1]
            mean = jnp.sum(y, axis=-1, keepdims=True) * inv_d
            mean_sq = jnp.sum(y * y, axis=-1, keepdims=True) * inv_d
            var = mean_sq - mean * mean
            inv_std = jax.lax.rsqrt(var + LN_EPS)        # EUP slot
            scale = inv_std * gamma                      # (tb,1)*(1,d) -> (tb,d)
            shift = beta - mean * scale
            y = jnp.maximum(y * scale + shift, 0.0)      # LN + affine + ReLU
        else:
            y = y + vec_ref[...].astype(jnp.float32)     # bias only
        h = y
    o_ref[...] = h.astype(o_ref.dtype)


def init_mlp_neck_params(key, in_features, layer_sizes, dtype=jnp.float32):
    """Deterministic synthetic parameters matching nn.Linear / nn.LayerNorm shapes."""
    ls = [in_features] + list(layer_sizes)
    params = []
    n_layers = len(layer_sizes)
    for step, (d_in, d_out) in enumerate(zip(ls[:-1], ls[1:])):
        key, kw, kb, kg, kbeta = jax.random.split(key, 5)
        # nn.Linear weight is (out, in); store transposed (in, out) for the kernel.
        w_t = (jax.random.normal(kw, (d_in, d_out), dtype) / jnp.sqrt(d_in)).astype(dtype)
        b = (0.01 * jax.random.normal(kb, (1, d_out), dtype)).astype(dtype)
        layer = {"w_t": w_t, "b": b}
        if step < n_layers - 1:  # LayerNorm only for non-final layers
            layer["gamma"] = (1.0 + 0.1 * jax.random.normal(kg, (1, d_out), dtype)).astype(dtype)
            layer["beta"] = (0.1 * jax.random.normal(kbeta, (1, d_out), dtype)).astype(dtype)
        params.append(layer)
    return params


def prepare_mlp_neck_params(raw_params, *, weight_dtype=jnp.bfloat16, vec_dtype=jnp.float32):
    """One-time kernel-side parameter prep (cache the result, do NOT call per-forward).

    - casts weights to bf16 (halves weight HBM traffic, bf16-native MXU on all gens),
    - packs bias/gamma/beta into a single (3, d) f32 array per hidden layer,
    - zero-pads the FINAL layer's weight/bias to a multiple of 128 lanes
      (exact: no LN/activation follows) so the output store is lane-dense.
    Returns (prepared_layers, out_dim).
    """
    n = len(raw_params)
    prepared = []
    for step, layer in enumerate(raw_params):
        w_t = layer["w_t"].astype(weight_dtype)
        b = layer["b"].astype(vec_dtype)
        if step < n - 1:
            vecs = jnp.concatenate(
                [b, layer["gamma"].astype(vec_dtype), layer["beta"].astype(vec_dtype)],
                axis=0)                                   # (3, d_out)
        else:
            pad = (-w_t.shape[1]) % LANE
            if pad:
                w_t = jnp.pad(w_t, ((0, 0), (0, pad)))
                b = jnp.pad(b, ((0, 0), (0, pad)))
            vecs = b                                      # (1, d_out_pad)
        prepared.append({"w_t": w_t, "vecs": vecs})
    out_dim = raw_params[-1]["w_t"].shape[1]
    return prepared, out_dim


def mlp_neck_forward(x, prepared_layers, out_dim, *, batch_tile=1024,
                     keep_lane_padding=False):
    """Forward pass of MLPNeck (eval mode) as a single fused Pallas kernel."""
    B, F_in = x.shape
    n_layers = len(prepared_layers)
    out_pad = prepared_layers[-1]["w_t"].shape[1]

    # ---- batch tile: sublane-aligned; capped at ceil(B/2) so the "parallel" batch
    # axis has >= 2 steps (keeps both v7x TensorCores busy; ~0.35us extra on v5e/v6e).
    half = -(-B // 2)
    half = -(-half // SUBLANE) * SUBLANE
    tb = max(SUBLANE, min(batch_tile, half))
    grid = pl.cdiv(B, tb)   # ragged last block handled by Pallas (reads unspecified,
                            # writes clipped) -- rows are independent, so this is safe.

    # ---- flatten args / specs (weights resident across the batch grid) ----
    flat_args = [x]
    in_specs = [pl.BlockSpec((tb, F_in), lambda i: (i, 0))]
    flops = 0
    bytes_accessed = B * F_in * jnp.dtype(x.dtype).itemsize
    for layer in prepared_layers:
        w_t, vecs = layer["w_t"], layer["vecs"]
        d_in, d_out = w_t.shape
        r = vecs.shape[0]
        flat_args += [w_t, vecs]
        in_specs += [
            pl.BlockSpec((d_in, d_out), lambda i: (0, 0)),
            pl.BlockSpec((r, d_out), lambda i: (0, 0)),
        ]
        flops += 2 * B * d_in * d_out
        bytes_accessed += (w_t.size * jnp.dtype(w_t.dtype).itemsize
                           + vecs.size * jnp.dtype(vecs.dtype).itemsize)
    bytes_accessed += B * out_pad * jnp.dtype(x.dtype).itemsize

    kernel = functools.partial(_fused_mlp_kernel, n_layers=n_layers)

    out = pl.pallas_call(
        kernel,
        out_shape=jax.ShapeDtypeStruct((B, out_pad), x.dtype),
        grid_spec=pltpu.PrefetchScalarGridSpec(
            num_scalar_prefetch=0,
            grid=(grid,),
            in_specs=in_specs,
            out_specs=pl.BlockSpec((tb, out_pad), lambda i: (i, 0)),
        ),
        compiler_params=pltpu.CompilerParams(
            dimension_semantics=("parallel",)),
        cost_estimate=pl.CostEstimate(
            flops=flops,
            transcendentals=B * max(n_layers - 1, 0),
            bytes_accessed=bytes_accessed),
    )(*flat_args)

    if keep_lane_padding:
        return out            # (B, out_pad) -- lets consumers skip an extra HBM copy
    return out[:, :out_dim]   # slice off the lane padding of the final layer


def _reference_forward(x, raw_params, weight_dtype=jnp.bfloat16):
    """Pure-JAX reference that mirrors the kernel's dtype path (bf16 matmul inputs,
    f32 accumulation and f32 elementwise math)."""
    n = len(raw_params)
    h = x.astype(jnp.float32)
    for step, layer in enumerate(raw_params):
        lhs = h.astype(weight_dtype).astype(jnp.float32)
        w = layer["w_t"].astype(weight_dtype).astype(jnp.float32)
        y = lhs @ w + layer["b"].astype(jnp.float32)
        if step < n - 1:
            mean = jnp.mean(y, axis=-1, keepdims=True)
            var = jnp.mean(jnp.square(y - mean), axis=-1, keepdims=True)
            y = (y - mean) * jax.lax.rsqrt(var + LN_EPS)
            y = y * layer["gamma"] + layer["beta"]
            y = jnp.maximum(y, 0.0)
        h = y
    return h


if __name__ == "__main__":
    key = jax.random.PRNGKey(0)
    k_x, k_p = jax.random.split(key)

    B = 16
    in_features = 128
    layer_sizes = [128, 64]

    x_f32 = jax.random.normal(k_x, (B, in_features), jnp.float32)
    raw_params = init_mlp_neck_params(k_p, in_features, layer_sizes)
    prepared, out_dim = prepare_mlp_neck_params(raw_params)   # one-time prep (cached)

    x = x_f32.astype(jnp.bfloat16)                            # bf16 activations
    out = jax.block_until_ready(mlp_neck_forward(x, prepared, out_dim))
    assert out.shape == (B, out_dim)

    ref = _reference_forward(x_f32, raw_params)
    assert jnp.allclose(out.astype(jnp.float32), ref, atol=5e-2, rtol=5e-2), \
        "mismatch vs reference"

    # Ragged-batch path: B not a multiple of the tile, no host-side padding of x.
    B2 = 20
    x2_f32 = jax.random.normal(jax.random.PRNGKey(3), (B2, in_features), jnp.float32)
    out2 = jax.block_until_ready(
        mlp_neck_forward(x2_f32.astype(jnp.bfloat16), prepared, out_dim, batch_tile=8))
    assert out2.shape == (B2, out_dim)
    assert jnp.allclose(out2.astype(jnp.float32), _reference_forward(x2_f32, raw_params),
                        atol=5e-2, rtol=5e-2)

    print("KERNEL_OK")
</pallas_src>

<mosaic_0001>
module attributes {stable_mosaic.version = 11 : i64} {
  func.func @_fused_mlp_kernel(%arg0: i32, %arg1: memref<8x128xbf16, #tpu.memory_space<vmem>>, %arg2: memref<128x128xbf16, #tpu.memory_space<vmem>>, %arg3: memref<3x128xf32, #tpu.memory_space<vmem>>, %arg4: memref<128x128xbf16, #tpu.memory_space<vmem>>, %arg5: memref<1x128xf32, #tpu.memory_space<vmem>>, %arg6: memref<8x128xbf16, #tpu.memory_space<vmem>>) attributes {dimension_semantics = [#tpu.dimension_semantics<parallel>], iteration_bounds = array<i64: 2>, scalar_prefetch = 0 : i64, scratch_operands = 0 : i64, tpu.core_type = #tpu.core_type<tc>, window_params = [{transform_indices = @transform_0, window_bounds = array<i64: 8, 128>}, {pipeline_mode = #tpu.pipeline_mode<synchronous>, transform_indices = @transform_1, window_bounds = array<i64: 128, 128>}, {pipeline_mode = #tpu.pipeline_mode<synchronous>, transform_indices = @transform_2, window_bounds = array<i64: 3, 128>}, {pipeline_mode = #tpu.pipeline_mode<synchronous>, transform_indices = @transform_3, window_bounds = array<i64: 128, 128>}, {pipeline_mode = #tpu.pipeline_mode<synchronous>, transform_indices = @transform_4, window_bounds = array<i64: 1, 128>}, {transform_indices = @transform_5, window_bounds = array<i64: 8, 128>}]} {
    %c0 = arith.constant 0 : index
    %c0_0 = arith.constant 0 : index
    %0 = vector.load %arg1[%c0, %c0_0] : memref<8x128xbf16, #tpu.memory_space<vmem>>, vector<8x128xbf16>
    %c0_1 = arith.constant 0 : index
    %c0_2 = arith.constant 0 : index
    %1 = vector.load %arg2[%c0_1, %c0_2] : memref<128x128xbf16, #tpu.memory_space<vmem>>, vector<128x128xbf16>
    %cst = arith.constant dense<0.000000e+00> : vector<8x128xf32>
    %2 = tpu.matmul %0, %1, %cst {dimension_numbers = #tpu.dot_dimension_numbers<[1], [0], [0], [1], [0, 0, 1, 1], [], []>} : vector<8x128xbf16>, vector<128x128xbf16>, vector<8x128xf32> -> vector<8x128xf32>
    %c0_3 = arith.constant 0 : index
    %c0_4 = arith.constant 0 : index
    %3 = vector.load %arg3[%c0_3, %c0_4] : memref<3x128xf32, #tpu.memory_space<vmem>>, vector<3x128xf32>
    %4 = vector.extract_strided_slice %3 {offsets = [0, 0], sizes = [1, 128], strides = [1, 1]} : vector<3x128xf32> to vector<1x128xf32>
    %5 = vector.extract_strided_slice %3 {offsets = [1, 0], sizes = [1, 128], strides = [1, 1]} : vector<3x128xf32> to vector<1x128xf32>
    %6 = vector.extract_strided_slice %3 {offsets = [2, 0], sizes = [1, 128], strides = [1, 1]} : vector<3x128xf32> to vector<1x128xf32>
    %7 = vector.broadcast %4 : vector<1x128xf32> to vector<8x128xf32>
    %8 = arith.addf %2, %7 : vector<8x128xf32>
    %cst_5 = arith.constant dense<0.000000e+00> : vector<8xf32>
    %9 = vector.multi_reduction <add>, %8, %cst_5 [1] : vector<8x128xf32> to vector<8xf32>
    %10 = vector.shape_cast %9 : vector<8xf32> to vector<8x1xf32>
    %cst_6 = arith.constant 7.812500e-03 : f32
    %11 = vector.broadcast %cst_6 : f32 to vector<8x1xf32>
    %12 = arith.mulf %10, %11 : vector<8x1xf32>
    %13 = arith.mulf %8, %8 : vector<8x128xf32>
    %cst_7 = arith.constant dense<0.000000e+00> : vector<8xf32>
    %14 = vector.multi_reduction <add>, %13, %cst_7 [1] : vector<8x128xf32> to vector<8xf32>
    %15 = vector.shape_cast %14 : vector<8xf32> to vector<8x1xf32>
    %cst_8 = arith.constant 7.812500e-03 : f32
    %16 = vector.broadcast %cst_8 : f32 to vector<8x1xf32>
    %17 = arith.mulf %15, %16 : vector<8x1xf32>
    %18 = arith.mulf %12, %12 : vector<8x1xf32>
    %19 = arith.subf %17, %18 : vector<8x1xf32>
    %cst_9 = arith.constant 9.99999974E-6 : f32
    %20 = vector.broadcast %cst_9 : f32 to vector<8x1xf32>
    %21 = arith.addf %19, %20 : vector<8x1xf32>
    %22 = math.rsqrt %21 : vector<8x1xf32>
    %23 = vector.broadcast %22 : vector<8x1xf32> to vector<8x128xf32>
    %24 = vector.broadcast %5 : vector<1x128xf32> to vector<8x128xf32>
    %25 = arith.mulf %23, %24 : vector<8x128xf32>
    %26 = vector.broadcast %12 : vector<8x1xf32> to vector<8x128xf32>
    %27 = arith.mulf %26, %25 : vector<8x128xf32>
    %28 = vector.broadcast %6 : vector<1x128xf32> to vector<8x128xf32>
    %29 = arith.subf %28, %27 : vector<8x128xf32>
    %30 = arith.mulf %8, %25 : vector<8x128xf32>
    %31 = arith.addf %30, %29 : vector<8x128xf32>
    %cst_10 = arith.constant 0.000000e+00 : f32
    %32 = vector.broadcast %cst_10 : f32 to vector<8x128xf32>
    %33 = arith.maximumf %31, %32 : vector<8x128xf32>
    %34 = arith.truncf %33 : vector<8x128xf32> to vector<8x128xbf16>
    %c0_11 = arith.constant 0 : index
    %c0_12 = arith.constant 0 : index
    %35 = vector.load %arg4[%c0_11, %c0_12] : memref<128x128xbf16, #tpu.memory_space<vmem>>, vector<128x128xbf16>
    %cst_13 = arith.constant dense<0.000000e+00> : vector<8x128xf32>
    %36 = tpu.matmul %34, %35, %cst_13 {dimension_numbers = #tpu.dot_dimension_numbers<[1], [0], [0], [1], [0, 0, 1, 1], [], []>} : vector<8x128xbf16>, vector<128x128xbf16>, vector<8x128xf32> -> vector<8x128xf32>
    %c0_14 = arith.constant 0 : index
    %c0_15 = arith.constant 0 : index
    %37 = vector.load %arg5[%c0_14, %c0_15] : memref<1x128xf32, #tpu.memory_space<vmem>>, vector<1x128xf32>
    %38 = vector.broadcast %37 : vector<1x128xf32> to vector<8x128xf32>
    %39 = arith.addf %36, %38 : vector<8x128xf32>
    %40 = arith.truncf %39 : vector<8x128xf32> to vector<8x128xbf16>
    %c0_16 = arith.constant 0 : index
    %c0_17 = arith.constant 0 : index
    %41 = vector.load %arg6[%c0_16, %c0_17] : memref<8x128xbf16, #tpu.memory_space<vmem>>, vector<8x128xbf16>
    tpu.vector_store %arg6[%c0_16, %c0_17], %40 {strides = array<i32>} : memref<8x128xbf16, #tpu.memory_space<vmem>>, vector<8x128xbf16>,
    return
  }
  func.func @transform_0(%arg0: i32) -> (i32, i32) {
    %c0_i32 = arith.constant 0 : i32
    %c0_i32_0 = arith.constant 0 : i32
    return %arg0, %c0_i32 : i32, i32
  }
  func.func @transform_1(%arg0: i32) -> (i32, i32) {
    %c0_i32 = arith.constant 0 : i32
    %c0_i32_0 = arith.constant 0 : i32
    %c0_i32_1 = arith.constant 0 : i32
    return %c0_i32, %c0_i32_0 : i32, i32
  }
  func.func @transform_2(%arg0: i32) -> (i32, i32) {
    %c0_i32 = arith.constant 0 : i32
    %c0_i32_0 = arith.constant 0 : i32
    %c0_i32_1 = arith.constant 0 : i32
    return %c0_i32, %c0_i32_0 : i32, i32
  }
  func.func @transform_3(%arg0: i32) -> (i32, i32) {
    %c0_i32 = arith.constant 0 : i32
    %c0_i32_0 = arith.constant 0 : i32
    %c0_i32_1 = arith.constant 0 : i32
    return %c0_i32, %c0_i32_0 : i32, i32
  }
  func.func @transform_4(%arg0: i32) -> (i32, i32) {
    %c0_i32 = arith.constant 0 : i32
    %c0_i32_0 = arith.constant 0 : i32
    %c0_i32_1 = arith.constant 0 : i32
    return %c0_i32, %c0_i32_0 : i32, i32
  }
  func.func @transform_5(%arg0: i32) -> (i32, i32) {
    %c0_i32 = arith.constant 0 : i32
    %c0_i32_0 = arith.constant 0 : i32
    return %arg0, %c0_i32 : i32, i32
  }
}

</mosaic_0001>

<llo_original>
// kernel: tpu_custom_call.1
$region0: #{tpu_custom_call.1}
  #allocation0 [shape = 'u32[]', space=smem, size = 0x4, offset = 0x4, fixed_abs, tag = 'smem constant byte address 0x4 - core index']
  #allocation1 [shape = 'u32[72,128]{1,0:T(1,128)}', space=vmem, size = 0x9000, scoped, tag = 'internal scratch']
  %s0 = inlined_call_operand.hbm [shape: bf16[16,128], index: 0, kind: input, shape index: {}]
  %s1 = inlined_call_operand.hbm [shape: bf16[128,128], index: 1, kind: input, shape index: {}]
  %s2 = inlined_call_operand.hbm [shape: f32[3,128], index: 2, kind: input, shape index: {}]
  %s3 = inlined_call_operand.hbm [shape: bf16[128,128], index: 3, kind: input, shape index: {}]
  %s4 = inlined_call_operand.vmem [shape: f32[1,128], index: 4, kind: input, shape index: {}]
  %s5 = inlined_call_operand.hbm [shape: bf16[16,128], index: 5, kind: output, shape index: {}]
  %s6 = sld [smem:[#allocation0]]
  $region69: #{tpu_custom_call.1} parent=0
    _
  %s8 = ssub.s32 1, %s6
  %s9 = scalar_select 0, %s8, %s6
  $region1: #{tpu_custom_call.1} parent=0
    #allocation2 [shape = 'u8[4096]{0}', space=vmem, size = 0x1000, scoped, tag = 'input window, operand 0']
    #allocation3 [shape = 's32[2]{0}', space=sflag, size = 0x8, scoped, tag = 'scoped memory for tpu_custom_call.1']
    #allocation4 [shape = 's32[2]{0}', space=sflag, size = 0x8, scoped, tag = 'scoped memory for tpu_custom_call.1']
    #allocation5 [shape = 'u8[32768]{0}', space=vmem, size = 0x8000, scoped, tag = 'input window, operand 1, single buffered']
    #allocation6 [shape = 's32[1]{0}', space=sflag, size = 0x4, scoped, tag = 'scoped memory for tpu_custom_call.1']
    #allocation7 [shape = 'u8[2048]{0}', space=vmem, size = 0x800, scoped, tag = 'input window, operand 2, single buffered']
    #allocation8 [shape = 'u8[32768]{0}', space=vmem, size = 0x8000, scoped, tag = 'input window, operand 3, single buffered']
    #allocation9 [shape = 's32[1]{0}', space=sflag, size = 0x4, scoped, tag = 'scoped memory for tpu_custom_call.1']
    #allocation10 [shape = 'u8[4096]{0}', space=vmem, size = 0x1000, scoped, tag = 'output window, operand 0']
    %10 = vsyncpa [#allocation3], 0
    %s11 = scalar_lea.sflag [#allocation3], 1
    %12 = vsyncpa %s11, 0
    %13 = vsyncpa [#allocation6], 0
    %14 = vsyncpa [#allocation9], 0
    %15 = vsyncpa [#allocation4], 0
    %s16 = scalar_lea.sflag [#allocation4], 1
    %17 = vsyncpa %s16, 0
    loop: start=0, step=1, limit=4
    $region2: #{tpu_custom_call.1} parent=1 // loop_pre_header
      _
    $region3: #{tpu_custom_call.1} parent=1 // loop_header
      %s19 = sphi 0, %s23
      %p20 = scmp.ge.s32.totalorder %s19, 4
      %s29 = sphi 0, %s31
      %s32 = sphi 0, %s29
      %s33 = sphi 0, %s32
      %s49 = sphi 0, %s33
      %s53 = sphi 0, %s53
      %s55 = sphi 0, %s53
      %s56 = sphi 0, %s55
      %s70 = sphi 0, %s56
      %s74 = sphi 0, %s74
      %s76 = sphi 0, %s74
      %s77 = sphi 0, %s76
      %s91 = sphi 0, %s77
      %s95 = sphi 0, %s95
      %s97 = sphi 0, %s95
      %s98 = sphi 0, %s97
      %s112 = sphi 0, %s98
      %s116 = sphi 0, %s116
      %s118 = sphi 0, %s116
      %s119 = sphi 0, %s118
      %s133 = sphi 0, %s119
      %s139 = sphi 0, %s141
      %s142 = sphi 0, %s139
      %s143 = sphi 0, %s142
      %s159 = sphi 0, %s143
    $region4: #{tpu_custom_call.1} parent=1 // loop_header_branch
      %22 = sbr.rel (%p20) target = $region8
    $region5: #{tpu_custom_call.1} parent=1 // loop_body
      %s24 = ssub.s32 %s19, 1
      %s25 = ssub.s32 %s19, 2
      %s26 = sadd.s32 %s19, 1
      %s27 = ssub.s32 %s19, %s26
      %p28 = scmp.eq.s32.totalorder %s27, 0
      %s30 = sadd.s32 %s29, 1
      %s31 = scalar_select %p28, %s29, %s30
      %p34 = pneg %p28
      %p35 = scmp.eq.s32.totalorder %s19, 1
      %p36 = por %p34, %p35
      %p37 = scmp.ne.s32.totalorder %s29, %s32
      %p38 = scmp.eq.s32.totalorder %s19, 0
      %p39 = por %p37, %p38
      %p40 = scmp.ne.s32.totalorder %s29, %s32
      %p41 = scmp.eq.s32.totalorder %s24, 1
      %p42 = por %p40, %p41
      %p43 = scmp.ne.s32.totalorder %s32, %s33
      %p44 = scmp.eq.s32.totalorder %s24, 0
      %p45 = por %p43, %p44
      %p46 = scmp.ne.s32.totalorder %s32, %s33
      %p47 = scmp.eq.s32.totalorder %s25, 1
      %p48 = por %p46, %p47
      %p50 = scmp.ne.s32.totalorder %s33, %s49
      %p51 = scmp.eq.s32.totalorder %s25, 0
      %p52 = por %p50, %p51
      %s54 = sadd.s32 %s53, 1
      %p57 = scmp.eq.s32.totalorder %s19, 1
      %p58 = scmp.ne.s32.totalorder %s53, %s55
      %p59 = scmp.eq.s32.totalorder %s19, 0
      %p60 = por %p58, %p59
      %p61 = scmp.ne.s32.totalorder %s53, %s55
      %p62 = scmp.eq.s32.totalorder %s24, 1
      %p63 = por %p61, %p62
      %p64 = scmp.ne.s32.totalorder %s55, %s56
      %p65 = scmp.eq.s32.totalorder %s24, 0
      %p66 = por %p64, %p65
      %p67 = scmp.ne.s32.totalorder %s55, %s56
      %p68 = scmp.eq.s32.totalorder %s25, 1
      %p69 = por %p67, %p68
      %p71 = scmp.ne.s32.totalorder %s56, %s70
      %p72 = scmp.eq.s32.totalorder %s25, 0
      %p73 = por %p71, %p72
      %s75 = sadd.s32 %s74, 1
      %p78 = scmp.eq.s32.totalorder %s19, 1
      %p79 = scmp.ne.s32.totalorder %s74, %s76
      %p80 = scmp.eq.s32.totalorder %s19, 0
      %p81 = por %p79, %p80
      %p82 = scmp.ne.s32.totalorder %s74, %s76
      %p83 = scmp.eq.s32.totalorder %s24, 1
      %p84 = por %p82, %p83
      %p85 = scmp.ne.s32.totalorder %s76, %s77
      %p86 = scmp.eq.s32.totalorder %s24, 0
      %p87 = por %p85, %p86
      %p88 = scmp.ne.s32.totalorder %s76, %s77
      %p89 = scmp.eq.s32.totalorder %s25, 1
      %p90 = por %p88, %p89
      %p92 = scmp.ne.s32.totalorder %s77, %s91
      %p93 = scmp.eq.s32.totalorder %s25, 0
      %p94 = por %p92, %p93
      %s96 = sadd.s32 %s95, 1
      %p99 = scmp.eq.s32.totalorder %s19, 1
      %p100 = scmp.ne.s32.totalorder %s95, %s97
      %p101 = scmp.eq.s32.totalorder %s19, 0
      %p102 = por %p100, %p101
      %p103 = scmp.ne.s32.totalorder %s95, %s97
      %p104 = scmp.eq.s32.totalorder %s24, 1
      %p105 = por %p103, %p104
      %p106 = scmp.ne.s32.totalorder %s97, %s98
      %p107 = scmp.eq.s32.totalorder %s24, 0
      %p108 = por %p106, %p107
      %p109 = scmp.ne.s32.totalorder %s97, %s98
      %p110 = scmp.eq.s32.totalorder %s25, 1
      %p111 = por %p109, %p110
      %p113 = scmp.ne.s32.totalorder %s98, %s112
      %p114 = scmp.eq.s32.totalorder %s25, 0
      %p115 = por %p113, %p114
      %s117 = sadd.s32 %s116, 1
      %p120 = scmp.eq.s32.totalorder %s19, 1
      %p121 = scmp.ne.s32.totalorder %s116, %s118
      %p122 = scmp.eq.s32.totalorder %s19, 0
      %p123 = por %p121, %p122
      %p124 = scmp.ne.s32.totalorder %s116, %s118
      %p125 = scmp.eq.s32.totalorder %s24, 1
      %p126 = por %p124, %p125
      %p127 = scmp.ne.s32.totalorder %s118, %s119
      %p128 = scmp.eq.s32.totalorder %s24, 0
      %p129 = por %p127, %p128
      %p130 = scmp.ne.s32.totalorder %s118, %s119
      %p131 = scmp.eq.s32.totalorder %s25, 1
      %p132 = por %p130, %p131
      %p134 = scmp.ne.s32.totalorder %s119, %s133
      %p135 = scmp.eq.s32.totalorder %s25, 0
      %p136 = por %p134, %p135
      %s137 = ssub.s32 %s19, %s26
      %p138 = scmp.eq.s32.totalorder %s137, 0
      %s140 = sadd.s32 %s139, 1
      %s141 = scalar_select %p138, %s139, %s140
      %p144 = pneg %p138
      %p145 = scmp.eq.s32.totalorder %s19, 1
      %p146 = por %p144, %p145
      %p147 = scmp.ne.s32.totalorder %s139, %s142
      %p148 = scmp.eq.s32.totalorder %s19, 0
      %p149 = por %p147, %p148
      %p150 = scmp.ne.s32.totalorder %s139, %s142
      %p151 = scmp.eq.s32.totalorder %s24, 1
      %p152 = por %p150, %p151
      %p153 = scmp.ne.s32.totalorder %s142, %s143
      %p154 = scmp.eq.s32.totalorder %s24, 0
      %p155 = por %p153, %p154
      %p156 = scmp.ne.s32.totalorder %s142, %s143
      %p157 = scmp.eq.s32.totalorder %s25, 1
      %p158 = por %p156, %p157
      %p160 = scmp.ne.s32.totalorder %s143, %s159
      %p161 = scmp.eq.s32.totalorder %s25, 0
      %p162 = por %p160, %p161
      %p163 = scmp.le.s32.totalorder 1, %s19
      %p164 = scmp.lt.s32.totalorder %s19, 3
      %p165 = pnand %p163, %p164
      %p166 = pneg %p165
      // Predicated region
      $region9: #{tpu_custom_call.1} parent=5 // pred_check
        _
      $region10: #{tpu_custom_call.1} parent=5 // pred_check_branch
        %168 = sbr.rel (%p165) target = $region12
      $region11: #{tpu_custom_call.1} parent=5 // pred_region
        %s169 = ssub.s32 %s19, 1
        // Predicated region
        $region13: #{tpu_custom_call.1} parent=11 // pred_check
          %p170 = pneg %p66
        $region14: #{tpu_custom_call.1} parent=11 // pred_check_branch
          %172 = sbr.rel (%p170) target = $region16
        $region15: #{tpu_custom_call.1} parent=11 // pred_region
          %174 = vsyncadd [#allocation6], 0
          %s175 = sshll.u32 %s1, 4
          %s176 = int_to_ptr.hbm [resolvable:$true] %s175
          %s177 = sshll.u32 [#allocation5], 4
          %s178 = int_to_ptr.vmem [resolvable:$true] %s177
          %183 = dma.hbm_to_vmem [thread:$0]  %s176, 1024, %s178, [#allocation6], 64, 64, 4
        $region16: #{tpu_custom_call.1} parent=11 // pred_fallthru
          _
        // Predicated region
        $region17: #{tpu_custom_call.1} parent=11 // pred_check
          %p184 = pneg %p87
        $region18: #{tpu_custom_call.1} parent=11 // pred_check_branch
          %186 = sbr.rel (%p184) target = $region20
        $region19: #{tpu_custom_call.1} parent=11 // pred_region
          %188 = vsyncadd [#allocation6], 0
          %s190 = sshll.u32 %s2, 4
          %s191 = int_to_ptr.hbm [resolvable:$true] %s190
          %s192 = sshll.u32 [#allocation7], 4
          %s193 = int_to_ptr.vmem [resolvable:$true] %s192
          %195 = dma.hbm_to_vmem [thread:$0]  %s191, 64, %s193, [#allocation6]
        $region20: #{tpu_custom_call.1} parent=11 // pred_fallthru
          _
        // Predicated region
        $region21: #{tpu_custom_call.1} parent=11 // pred_check
          %p196 = pneg %p108
        $region22: #{tpu_custom_call.1} parent=11 // pred_check_branch
          %198 = sbr.rel (%p196) target = $region24
        $region23: #{tpu_custom_call.1} parent=11 // pred_region
          %200 = vsyncadd [#allocation9], 0
          %s201 = sshll.u32 %s3, 4
          %s202 = int_to_ptr.hbm [resolvable:$true] %s201
          %s203 = sshll.u32 [#allocation8], 4
          %s204 = int_to_ptr.vmem [resolvable:$true] %s203
          %209 = dma.hbm_to_vmem [thread:$0]  %s202, 1024, %s204, [#allocation9], 64, 64, 4
        $region24: #{tpu_custom_call.1} parent=11 // pred_fallthru
          _
        // Predicated region
        $region25: #{tpu_custom_call.1} parent=11 // pred_check
          %p210 = pneg %p129
        $region26: #{tpu_custom_call.1} parent=11 // pred_check_branch
          %212 = sbr.rel (%p210) target = $region28
        $region27: #{tpu_custom_call.1} parent=11 // pred_region
          _
        $region28: #{tpu_custom_call.1} parent=11 // pred_fallthru
          _
      $region12: #{tpu_custom_call.1} parent=5 // pred_fallthru
        _
      %p213 = scmp.lt.s32.totalorder %s19, 2
      // Predicated region
      $region29: #{tpu_custom_call.1} parent=5 // pred_check
        %p214 = pneg %p213
      $region30: #{tpu_custom_call.1} parent=5 // pred_check_branch
        %216 = sbr.rel (%p214) target = $region32
      $region31: #{tpu_custom_call.1} parent=5 // pred_region
        // Predicated region
        $region33: #{tpu_custom_call.1} parent=31 // pred_check
          %p217 = pneg %p39
        $region34: #{tpu_custom_call.1} parent=31 // pred_check_branch
          %219 = sbr.rel (%p217) target = $region36
        $region35: #{tpu_custom_call.1} parent=31 // pred_region
          %s220 = sand.u32 %s29, 1
          %s221 = scalar_lea.sflag [#allocation3], %s220
          %s222 = sand.u32 %s29, 1
          %s223 = smul.addr %s222, 4
          %s224 = scalar_lea.vmem [#allocation2], %s223
          %226 = vsyncadd %s221, 0
          %s227 = smul.addr %s19, 4
          %s228 = scalar_lea.hbm %s0, %s227
          %s230 = sshll.u32 %s228, 4
          %s231 = int_to_ptr.hbm [resolvable:$true] %s230
          %s232 = sshll.u32 %s224, 4
          %s233 = int_to_ptr.vmem [resolvable:$true] %s232
          %235 = dma.hbm_to_vmem [thread:$0]  %s231, 64, %s233, %s221
        $region36: #{tpu_custom_call.1} parent=31 // pred_fallthru
          _
      $region32: #{tpu_custom_call.1} parent=5 // pred_fallthru
        _
      %p236 = scmp.le.s32.totalorder 1, %s19
      %p237 = scmp.lt.s32.totalorder %s19, 3
      %p238 = pnand %p236, %p237
      %p239 = pneg %p238
      // Predicated region
      $region37: #{tpu_custom_call.1} parent=5 // pred_check
        _
      $region38: #{tpu_custom_call.1} parent=5 // pred_check_branch
        %241 = sbr.rel (%p238) target = $region40
      $region39: #{tpu_custom_call.1} parent=5 // pred_region
        %s242 = ssub.s32 %s19, 1
        %s243 = sand.u32 %s32, 1
        %s244 = scalar_lea.sflag [#allocation3], %s243
        %s245 = sand.u32 %s32, 1
        %s246 = smul.addr %s245, 4
        %s247 = scalar_lea.vmem [#allocation2], %s246
        // Predicated region
        $region41: #{tpu_custom_call.1} parent=39 // pred_check
          %p248 = pneg %p45
        $region42: #{tpu_custom_call.1} parent=39 // pred_check_branch
          %250 = sbr.rel (%p248) target = $region44
        $region43: #{tpu_custom_call.1} parent=39 // pred_region
          %252 = dma.done %s244, 64
        $region44: #{tpu_custom_call.1} parent=39 // pred_fallthru
          _
        // Predicated region
        $region45: #{tpu_custom_call.1} parent=39 // pred_check
          %p253 = pneg %p66
        $region46: #{tpu_custom_call.1} parent=39 // pred_check_branch
          %255 = sbr.rel (%p253) target = $region48
        $region47: #{tpu_custom_call.1} parent=39 // pred_region
          %257 = dma.done [#allocation6], 1024
        $region48: #{tpu_custom_call.1} parent=39 // pred_fallthru
          _
        // Predicated region
        $region49: #{tpu_custom_call.1} parent=39 // pred_check
          %p258 = pneg %p87
        $region50: #{tpu_custom_call.1} parent=39 // pred_check_branch
          %260 = sbr.rel (%p258) target = $region52
        $region51: #{tpu_custom_call.1} parent=39 // pred_region
          %262 = dma.done [#allocation6], 64
        $region52: #{tpu_custom_call.1} parent=39 // pred_fallthru
          _
        // Predicated region
        $region53: #{tpu_custom_call.1} parent=39 // pred_check
          %p263 = pneg %p108
        $region54: #{tpu_custom_call.1} parent=39 // pred_check_branch
          %265 = sbr.rel (%p263) target = $region56
        $region55: #{tpu_custom_call.1} parent=39 // pred_region
          %267 = dma.done [#allocation9], 1024
        $region56: #{tpu_custom_call.1} parent=39 // pred_fallthru
          _
        %s268 = sand.u32 %s32, 1
        %s269 = scalar_lea.sflag [#allocation3], %s268
        %s270 = sand.u32 %s32, 1
        %s271 = smul.addr %s270, 4
        %s272 = scalar_lea.vmem [#allocation2], %s271
        %p273 = pneg %p45
        %p274 = pneg %p42
        %p275 = pneg %p66
        %p276 = pneg %p63
        %p277 = pneg %p87
        %p278 = pneg %p84
        %p279 = pneg %p108
        %p280 = pneg %p105
        %p281 = pneg %p129
        %p282 = pneg %p126
        %p283 = pneg %p155
        %p284 = pneg %p152
        %s285 = sand.u32 %s142, 1
        %s286 = scalar_lea.sflag [#allocation4], %s285
        %s287 = sand.u32 %s142, 1
        %s288 = smul.addr %s287, 4
        %s289 = scalar_lea.vmem [#allocation10], %s288
        %v290 = vld [vmem:[%s247] sm:$0xf]
        %v291 = vld [vmem:[#allocation5] sm:$0xf]
        %v292 = vld [vmem:[#allocation5 + $0x4] sm:$0xf]
        %v293 = vld [vmem:[#allocation5 + $0x8] sm:$0xf]
        %v294 = vld [vmem:[#allocation5 + $0xc] sm:$0xf]
        %v295 = vld [vmem:[#allocation5 + $0x10] sm:$0xf]
        %v296 = vld [vmem:[#allocation5 + $0x14] sm:$0xf]
        %v297 = vld [vmem:[#allocation5 + $0x18] sm:$0xf]
        %v298 = vld [vmem:[#allocation5 + $0x1c] sm:$0xf]
        %v299 = vld [vmem:[#allocation5 + $0x20] sm:$0xf]
        %v300 = vld [vmem:[#allocation5 + $0x24] sm:$0xf]
        %v301 = vld [vmem:[#allocation5 + $0x28] sm:$0xf]
        %v302 = vld [vmem:[#allocation5 + $0x2c] sm:$0xf]
        %v303 = vld [vmem:[#allocation5 + $0x30] sm:$0xf]
        %v304 = vld [vmem:[#allocation5 + $0x34] sm:$0xf]
        %v305 = vld [vmem:[#allocation5 + $0x38] sm:$0xf]
        %v306 = vld [vmem:[#allocation5 + $0x3c] sm:$0xf]
        %v307 = vld [vmem:[#allocation7] sm:$0x7]
        %v308 = vperm.slane %v307, 0
        %v325 = vunpack.c.l.b16 %v291
        %v326 = vunpack.c.l.b16 %v292
        %v327 = vunpack.c.l.b16 %v293
        %v328 = vunpack.c.l.b16 %v294
        %v329 = vunpack.c.l.b16 %v295
        %v330 = vunpack.c.l.b16 %v296
        %v331 = vunpack.c.l.b16 %v297
        %v332 = vunpack.c.l.b16 %v298
        %v333 = vunpack.c.l.b16 %v299
        %v334 = vunpack.c.l.b16 %v300
        %v335 = vunpack.c.l.b16 %v301
        %v336 = vunpack.c.l.b16 %v302
        %v337 = vunpack.c.l.b16 %v303
        %v338 = vunpack.c.l.b16 %v304
        %v339 = vunpack.c.l.b16 %v305
        %v340 = vunpack.c.l.b16 %v306
        %v341 = vpack.c.b16 %v326, %v325
        %v342 = vpack.c.b16 %v328, %v327
        %v343 = vpack.c.b16 %v330, %v329
        %v344 = vpack.c.b16 %v332, %v331
        %v345 = vpack.c.b16 %v334, %v333
        %v346 = vpack.c.b16 %v336, %v335
        %v347 = vpack.c.b16 %v338, %v337
        %v348 = vpack.c.b16 %v340, %v339
        %357 = vmatpush.bf16.msra.mxu0 %v348
        %358 = vmatpush.bf16.msra.mxu0 %v347
        %359 = vmatpush.bf16.msra.mxu0 %v346
        %360 = vmatpush.bf16.msra.mxu0 %v345
        %361 = vmatpush.bf16.msra.mxu0 %v344
        %362 = vmatpush.bf16.msra.mxu0 %v343
        %363 = vmatpush.bf16.msra.mxu0 %v342
        %364 = vmatpush.bf16.msra.mxu0 %v341
        %365 = vmatmul.bf16.gmra.mxu0 %v290
        %v366 = vpop.f32.mrf.mxu0
        %v367 = vadd.f32 %v308, %v366
        %v368 = vpop.f32.mrf.mxu0
        %369 = vdwg.mxu0
        %370 = vadd.xlane.f32.xlu0 %v367
        %v371 = vpop.xlane.xlu0 %370
        %v372 = vmul.f32 %v371, 0.0078125
        %v373 = vmul.f32 %v367, %v367
        %374 = vadd.xlane.f32.xlu0 %v373
        %v375 = vpop.xlane.xlu0 %374
        %v376 = vmul.f32 %v375, 0.0078125
        %v377 = vmul.f32 %v372, %v372
        %v378 = vsub.f32 %v376, %v377
        %v379 = vadd.f32 %v378, 1e-05
        %v380 = vrsqrt.pop %v379
        %v381 = vmul.f32 %v380, %v379
        %v382 = vmul.f32 %v381, %v380
        %v383 = vmul.f32 0.5, %v382
        %v384 = vsub.f32 1.5, %v383
        %v385 = vmul.f32 %v380, %v384
        %vm386 = vweird.f32 %v379
        %vm387 = vweird.f32 %v380
        %vm388 = vmor %vm386, %vm387
        %v389 = vsel %vm388, %v380, %v385
        %v390 = vperm.slane %v307, 1
        %v391 = vmul.f32 %v389, %v390
        %v392 = vmul.f32 %v372, %v391
        %v393 = vperm.slane %v307, 2
        %v394 = vsub.f32 %v393, %v392
        %v395 = vmul.f32 %v367, %v391
        %v396 = vadd.f32 %v395, %v394
        %v397 = vmax.f32 %v396, 0.0
        %v398 = vpack.c.bf16 %v397, %v397
        %v399 = vld [vmem:[#allocation8] sm:$0xf]
        %v400 = vld [vmem:[#allocation8 + $0x4] sm:$0xf]
        %v401 = vld [vmem:[#allocation8 + $0x8] sm:$0xf]
        %v402 = vld [vmem:[#allocation8 + $0xc] sm:$0xf]
        %v403 = vld [vmem:[#allocation8 + $0x10] sm:$0xf]
        %v404 = vld [vmem:[#allocation8 + $0x14] sm:$0xf]
        %v405 = vld [vmem:[#allocation8 + $0x18] sm:$0xf]
        %v406 = vld [vmem:[#allocation8 + $0x1c] sm:$0xf]
        %v407 = vld [vmem:[#allocation8 + $0x20] sm:$0xf]
        %v408 = vld [vmem:[#allocation8 + $0x24] sm:$0xf]
        %v409 = vld [vmem:[#allocation8 + $0x28] sm:$0xf]
        %v410 = vld [vmem:[#allocation8 + $0x2c] sm:$0xf]
        %v411 = vld [vmem:[#allocation8 + $0x30] sm:$0xf]
        %v412 = vld [vmem:[#allocation8 + $0x34] sm:$0xf]
        %v413 = vld [vmem:[#allocation8 + $0x38] sm:$0xf]
        %v414 = vld [vmem:[#allocation8 + $0x3c] sm:$0xf]
        %v415 = vld [vmem:[%s4] sm:$0x1]
        %v417 = vperm.slane %v415, 0
        %v435 = vunpack.c.l.b16 %v399
        %v436 = vunpack.c.l.b16 %v400
        %v437 = vunpack.c.l.b16 %v401
        %v438 = vunpack.c.l.b16 %v402
        %v439 = vunpack.c.l.b16 %v403
        %v440 = vunpack.c.l.b16 %v404
        %v441 = vunpack.c.l.b16 %v405
        %v442 = vunpack.c.l.b16 %v406
        %v443 = vunpack.c.l.b16 %v407
        %v444 = vunpack.c.l.b16 %v408
        %v445 = vunpack.c.l.b16 %v409
        %v446 = vunpack.c.l.b16 %v410
        %v447 = vunpack.c.l.b16 %v411
        %v448 = vunpack.c.l.b16 %v412
        %v449 = vunpack.c.l.b16 %v413
        %v450 = vunpack.c.l.b16 %v414
        %v451 = vpack.c.b16 %v436, %v435
        %v452 = vpack.c.b16 %v438, %v437
        %v453 = vpack.c.b16 %v440, %v439
        %v454 = vpack.c.b16 %v442, %v441
        %v455 = vpack.c.b16 %v444, %v443
        %v456 = vpack.c.b16 %v446, %v445
        %v457 = vpack.c.b16 %v448, %v447
        %v458 = vpack.c.b16 %v450, %v449
        %467 = vmatpush.bf16.msra.mxu0 %v458
        %468 = vmatpush.bf16.msra.mxu0 %v457
        %469 = vmatpush.bf16.msra.mxu0 %v456
        %470 = vmatpush.bf16.msra.mxu0 %v455
        %471 = vmatpush.bf16.msra.mxu0 %v454
        %472 = vmatpush.bf16.msra.mxu0 %v453
        %473 = vmatpush.bf16.msra.mxu0 %v452
        %474 = vmatpush.bf16.msra.mxu0 %v451
        %475 = vmatmul.bf16.gmra.mxu0 %v398
        %v476 = vpop.f32.mrf.mxu0
        %v477 = vadd.f32 %v417, %v476
        %v478 = vpop.f32.mrf.mxu0
        %479 = vdwg.mxu0
        %v480 = vpack.c.bf16 %v477, %v477
        %481 = vst [vmem:[%s289] sm:$0xf] %v480
        %s482 = sand.u32 %s142, 1
        %s483 = scalar_lea.sflag [#allocation4], %s482
        %s484 = sand.u32 %s142, 1
        %s485 = smul.addr %s484, 4
        %s486 = scalar_lea.vmem [#allocation10], %s485
        // Predicated region
        $region57: #{tpu_custom_call.1} parent=39 // pred_check
          %p487 = pneg %p152
        $region58: #{tpu_custom_call.1} parent=39 // pred_check_branch
          %489 = sbr.rel (%p487) target = $region60
        $region59: #{tpu_custom_call.1} parent=39 // pred_region
          %491 = vsyncadd %s483, 0
          %s492 = smul.addr %s24, 4
          %s493 = scalar_lea.hbm %s5, %s492
          %s495 = sshll.u32 %s486, 4
          %s496 = int_to_ptr.vmem [resolvable:$true] %s495
          %s497 = sshll.u32 %s493, 4
          %s498 = int_to_ptr.hbm [resolvable:$true] %s497
          %500 = dma.vmem_to_hbm [thread:$0]  %s496, 64, %s498, %s483
        $region60: #{tpu_custom_call.1} parent=39 // pred_fallthru
          _
      $region40: #{tpu_custom_call.1} parent=5 // pred_fallthru
        _
      %p501 = scmp.le.s32.totalorder 2, %s19
      // Predicated region
      $region61: #{tpu_custom_call.1} parent=5 // pred_check
        %p502 = pneg %p501
      $region62: #{tpu_custom_call.1} parent=5 // pred_check_branch
        %504 = sbr.rel (%p502) target = $region64
      $region63: #{tpu_custom_call.1} parent=5 // pred_region
        %s505 = ssub.s32 %s19, 2
        // Predicated region
        $region65: #{tpu_custom_call.1} parent=63 // pred_check
          %p506 = pneg %p158
        $region66: #{tpu_custom_call.1} parent=63 // pred_check_branch
          %508 = sbr.rel (%p506) target = $region68
        $region67: #{tpu_custom_call.1} parent=63 // pred_region
          %s509 = sand.u32 %s143, 1
          %s510 = scalar_lea.sflag [#allocation4], %s509
          %s511 = sand.u32 %s143, 1
          %s512 = smul.addr %s511, 4
          %s513 = scalar_lea.vmem [#allocation10], %s512
          %515 = dma.done %s510, 64
        $region68: #{tpu_custom_call.1} parent=63 // pred_fallthru
          _
      $region64: #{tpu_custom_call.1} parent=5 // pred_fallthru
        _
    $region6: #{tpu_custom_call.1} parent=1 // loop_footer
      %s23 = sadd.s32 1, %s19
    $region7: #{tpu_custom_call.1} parent=1 // loop_footer_branch
      %18 = sbr.rel target = $region3
    $region8: #{tpu_custom_call.1} parent=1 // loop_exit
      _
    %516 = vsyncpa [#allocation3], 1
    %s517 = scalar_lea.sflag [#allocation3], 1
    %518 = vsyncpa %s517, 1
    %519 = vsyncpa [#allocation6], 1
    %520 = vsyncpa [#allocation9], 1
    %521 = vsyncpa [#allocation4], 1
    %s522 = scalar_lea.sflag [#allocation4], 1
    %523 = vsyncpa %s522, 1

</llo_original>
